<compile_context>
chip_gen: v7x
topology: tpu7x:2x2x1
jax: 0.10.0
libtpu: 0.0.40
codegen_flags: <defaults>
</compile_context>

<pallas_src>
import functools

import jax
import jax.numpy as jnp
from jax import lax
from jax.experimental import pallas as pl
from jax.experimental.pallas import tpu as pltpu

LANES = 128   # TPU lane width; hidden (64) and fused head output padded to this
HIDDEN = 64


def _round_up(n, m):
    return (n + m - 1) // m * m


def _slab_layout(feature_dim):
    """Row offsets of each parameter inside the packed (rows, 128) slab.

    Every segment starts on a multiple of 8 rows so static slices stay
    (8,128)-tile aligned.
    """
    f_pad = _round_up(feature_dim, 8)
    h_pad = LANES                      # hidden zero-padded 64 -> 128 lanes
    o_w1 = 0                           # (f_pad, 128)   [cols 64..127 are zero]
    o_b1 = o_w1 + f_pad                # row o_b1       (8-row segment, 1 used)
    o_w2 = o_b1 + 8                    # (128, 128)     [pad rows/cols are zero]
    o_b2 = o_w2 + h_pad
    o_wh = o_b2 + 8                    # (128, 128)     [Wmu | Wsg | zeros]
    o_bh = o_wh + h_pad                # [bmu | bsg | zeros]
    rows = o_bh + 8
    return dict(f_pad=f_pad, h_pad=h_pad, o_b1=o_b1, o_w2=o_w2, o_b2=o_b2,
                o_wh=o_wh, o_bh=o_bh, rows=rows)


def actor_kernel(x_ref, p_ref, out_ref, *, f_pad, h_pad, o_b1, o_w2, o_b2,
                 o_wh, o_bh, action_dim):
    x = x_ref[...]                                    # (Bblk, f_pad)

    # Static, aligned slices of the packed parameter slab (zero runtime cost).
    w1 = p_ref[0:f_pad, :]                            # (f_pad, 128)
    b1 = p_ref[o_b1:o_b1 + 1, :]                      # (1, 128)
    w2 = p_ref[o_w2:o_w2 + h_pad, :]                  # (128, 128)
    b2 = p_ref[o_b2:o_b2 + 1, :]
    wh = p_ref[o_wh:o_wh + h_pad, :]                  # fused [Wmu | Wsg | 0]
    bh = p_ref[o_bh:o_bh + 1, :]

    # shared_net: Linear -> ReLU -> Linear -> ReLU (pad lanes stay exactly 0)
    h1 = jnp.maximum(jnp.dot(x, w1, preferred_element_type=jnp.float32) + b1, 0.0)
    h2 = jnp.maximum(jnp.dot(h1, w2, preferred_element_type=jnp.float32) + b2, 0.0)

    # fused heads: one MXU pass, one lane-dense (Bblk, 128) output
    y = jnp.dot(h2, wh, preferred_element_type=jnp.float32) + bh

    col = lax.broadcasted_iota(jnp.int32, y.shape, 1)
    mu = jnp.tanh(y)
    softplus = jnp.log1p(jnp.exp(-jnp.abs(y))) + jnp.maximum(y, 0.0)
    sigma = softplus + 0.0001
    out_ref[...] = jnp.where(col < action_dim, mu,
                             jnp.where(col < 2 * action_dim, sigma, 0.0))


def pack_params(params, feature_dim, action_dim):
    """Pack all weights/biases into one zero-padded (rows, 128) f32 slab."""
    assert 2 * action_dim <= LANES, "fused head must fit in 128 lanes"
    L = _slab_layout(feature_dim)
    A = action_dim
    slab = jnp.zeros((L["rows"], LANES), jnp.float32)
    slab = slab.at[0:feature_dim, 0:HIDDEN].set(params["w1"])
    slab = slab.at[L["o_b1"], 0:HIDDEN].set(params["b1"].reshape(-1))
    slab = slab.at[L["o_w2"]:L["o_w2"] + HIDDEN, 0:HIDDEN].set(params["w2"])
    slab = slab.at[L["o_b2"], 0:HIDDEN].set(params["b2"].reshape(-1))
    slab = slab.at[L["o_wh"]:L["o_wh"] + HIDDEN, 0:A].set(params["wmu"])
    slab = slab.at[L["o_wh"]:L["o_wh"] + HIDDEN, A:2 * A].set(params["wsg"])
    slab = slab.at[L["o_bh"], 0:A].set(params["bmu"].reshape(-1))
    slab = slab.at[L["o_bh"], A:2 * A].set(params["bsg"].reshape(-1))
    return slab


@functools.partial(jax.jit, static_argnames=("action_dim",))
def actor_forward(x, slab, *, action_dim):
    B, F = x.shape
    L = _slab_layout(F)
    f_pad = L["f_pad"]

    # Batch tiling: one grid step for small B; <=128-row blocks for large B,
    # sharded across TensorCores via "parallel" on v7x.
    block_b = min(128, _round_up(B, 8))
    b_pad = _round_up(B, block_b)
    grid = (b_pad // block_b,)

    x_p = x.astype(jnp.float32)
    if b_pad != B or f_pad != F:
        x_p = jnp.zeros((b_pad, f_pad), jnp.float32).at[:B, :F].set(x_p)

    kernel = functools.partial(
        actor_kernel, f_pad=f_pad, h_pad=L["h_pad"], o_b1=L["o_b1"],
        o_w2=L["o_w2"], o_b2=L["o_b2"], o_wh=L["o_wh"], o_bh=L["o_bh"],
        action_dim=action_dim)

    out = pl.pallas_call(
        kernel,
        out_shape=jax.ShapeDtypeStruct((b_pad, LANES), jnp.float32),
        grid_spec=pltpu.PrefetchScalarGridSpec(
            num_scalar_prefetch=0,
            grid=grid,
            in_specs=[
                # activations: one (block_b, f_pad) tile per grid step
                pl.BlockSpec((block_b, f_pad), lambda i: (i, 0)),
                # packed weight slab: same block every step -> single DMA,
                # VMEM-resident across batch tiles
                pl.BlockSpec((L["rows"], LANES), lambda i: (0, 0)),
            ],
            out_specs=pl.BlockSpec((block_b, LANES), lambda i: (i, 0)),
        ),
        compiler_params=pltpu.CompilerParams(
            dimension_semantics=("parallel",)),
    )(x_p, slab)

    mu = out[:B, :action_dim]
    sigma = out[:B, action_dim:2 * action_dim]
    return mu, sigma


def init_params(key, feature_dim, action_dim, hidden=HIDDEN):
    """Parameter init mimicking the PyTorch module's shapes.

    nn.Linear stores weight as (out, in); we keep the transpose (in, out) so the
    kernel computes x @ W. Head weights follow nn.init.uniform_(-0.001, 0.001).
    """
    ks = jax.random.split(key, 8)

    def lin_init(kw, kb, fan_in, fan_out):
        bound = 1.0 / jnp.sqrt(jnp.float32(fan_in))
        w = jax.random.uniform(kw, (fan_in, fan_out), jnp.float32, -bound, bound)
        b = jax.random.uniform(kb, (1, fan_out), jnp.float32, -bound, bound)
        return w, b

    w1, b1 = lin_init(ks[0], ks[1], feature_dim, hidden)
    w2, b2 = lin_init(ks[2], ks[3], hidden, hidden)

    wmu = jax.random.uniform(ks[4], (hidden, action_dim), jnp.float32, -0.001, 0.001)
    wsg = jax.random.uniform(ks[5], (hidden, action_dim), jnp.float32, -0.001, 0.001)
    bound_h = 1.0 / jnp.sqrt(jnp.float32(hidden))
    bmu = jax.random.uniform(ks[6], (1, action_dim), jnp.float32, -bound_h, bound_h)
    bsg = jax.random.uniform(ks[7], (1, action_dim), jnp.float32, -bound_h, bound_h)

    return {"w1": w1, "b1": b1, "w2": w2, "b2": b2,
            "wmu": wmu, "bmu": bmu, "wsg": wsg, "bsg": bsg}


def actor_forward_ref(x, p):
    """Pure-JAX reference for correctness check."""
    h1 = jnp.maximum(x @ p["w1"] + p["b1"], 0.0)
    h2 = jnp.maximum(h1 @ p["w2"] + p["b2"], 0.0)
    mu = jnp.tanh(h2 @ p["wmu"] + p["bmu"])
    sigma = jax.nn.softplus(h2 @ p["wsg"] + p["bsg"]) + 0.0001
    return mu, sigma


if __name__ == "__main__":
    key = jax.random.PRNGKey(0)
    k_x, k_p = jax.random.split(key)

    batch, feature_dim, action_dim = 8, 32, 4
    x = jax.random.normal(k_x, (batch, feature_dim), jnp.float32)
    params = init_params(k_p, feature_dim, action_dim)
    slab = pack_params(params, feature_dim, action_dim)

    mu, sigma = actor_forward(x, slab, action_dim=action_dim)
    jax.block_until_ready((mu, sigma))

    mu_ref, sigma_ref = actor_forward_ref(x, params)
    assert mu.shape == (batch, action_dim) and sigma.shape == (batch, action_dim)
    assert jnp.allclose(mu, mu_ref, atol=1e-5, rtol=1e-5)
    assert jnp.allclose(sigma, sigma_ref, atol=1e-5, rtol=1e-5)
    assert bool(jnp.all(sigma > 0.0))

    print("KERNEL_OK")
</pallas_src>

<mosaic_0001>
module attributes {stable_mosaic.version = 11 : i64} {
  func.func @actor_kernel(%arg0: i32, %arg1: memref<8x32xf32, #tpu.memory_space<vmem>>, %arg2: memref<312x128xf32, #tpu.memory_space<vmem>>, %arg3: memref<8x128xf32, #tpu.memory_space<vmem>>) attributes {dimension_semantics = [#tpu.dimension_semantics<parallel>], iteration_bounds = array<i64: 1>, scalar_prefetch = 0 : i64, scratch_operands = 0 : i64, tpu.core_type = #tpu.core_type<tc>, window_params = [{transform_indices = @transform_0, window_bounds = array<i64: 8, 32>}, {pipeline_mode = #tpu.pipeline_mode<synchronous>, transform_indices = @transform_1, window_bounds = array<i64: 312, 128>}, {transform_indices = @transform_2, window_bounds = array<i64: 8, 128>}]} {
    %c0 = arith.constant 0 : index
    %c0_0 = arith.constant 0 : index
    %0 = vector.load %arg1[%c0, %c0_0] : memref<8x32xf32, #tpu.memory_space<vmem>>, vector<8x32xf32>
    %c0_1 = arith.constant 0 : index
    %c0_2 = arith.constant 0 : index
    %1 = vector.load %arg2[%c0_1, %c0_2] : memref<312x128xf32, #tpu.memory_space<vmem>>, vector<32x128xf32>
    %c32 = arith.constant 32 : index
    %c0_3 = arith.constant 0 : index
    %2 = vector.load %arg2[%c32, %c0_3] : memref<312x128xf32, #tpu.memory_space<vmem>>, vector<1x128xf32>
    %c40 = arith.constant 40 : index
    %c0_4 = arith.constant 0 : index
    %3 = vector.load %arg2[%c40, %c0_4] : memref<312x128xf32, #tpu.memory_space<vmem>>, vector<128x128xf32>
    %c168 = arith.constant 168 : index
    %c0_5 = arith.constant 0 : index
    %4 = vector.load %arg2[%c168, %c0_5] : memref<312x128xf32, #tpu.memory_space<vmem>>, vector<1x128xf32>
    %c176 = arith.constant 176 : index
    %c0_6 = arith.constant 0 : index
    %5 = vector.load %arg2[%c176, %c0_6] : memref<312x128xf32, #tpu.memory_space<vmem>>, vector<128x128xf32>
    %c304 = arith.constant 304 : index
    %c0_7 = arith.constant 0 : index
    %6 = vector.load %arg2[%c304, %c0_7] : memref<312x128xf32, #tpu.memory_space<vmem>>, vector<1x128xf32>
    %cst = arith.constant dense<0.000000e+00> : vector<8x128xf32>
    %7 = tpu.matmul %0, %1, %cst {dimension_numbers = #tpu.dot_dimension_numbers<[1], [0], [0], [1], [0, 0, 1, 1], [], []>} : vector<8x32xf32>, vector<32x128xf32>, vector<8x128xf32> -> vector<8x128xf32>
    %8 = vector.broadcast %2 : vector<1x128xf32> to vector<8x128xf32>
    %9 = arith.addf %7, %8 : vector<8x128xf32>
    %cst_8 = arith.constant 0.000000e+00 : f32
    %10 = vector.broadcast %cst_8 : f32 to vector<8x128xf32>
    %11 = arith.maximumf %9, %10 : vector<8x128xf32>
    %cst_9 = arith.constant dense<0.000000e+00> : vector<8x128xf32>
    %12 = tpu.matmul %11, %3, %cst_9 {dimension_numbers = #tpu.dot_dimension_numbers<[1], [0], [0], [1], [0, 0, 1, 1], [], []>} : vector<8x128xf32>, vector<128x128xf32>, vector<8x128xf32> -> vector<8x128xf32>
    %13 = vector.broadcast %4 : vector<1x128xf32> to vector<8x128xf32>
    %14 = arith.addf %12, %13 : vector<8x128xf32>
    %cst_10 = arith.constant 0.000000e+00 : f32
    %15 = vector.broadcast %cst_10 : f32 to vector<8x128xf32>
    %16 = arith.maximumf %14, %15 : vector<8x128xf32>
    %cst_11 = arith.constant dense<0.000000e+00> : vector<8x128xf32>
    %17 = tpu.matmul %16, %5, %cst_11 {dimension_numbers = #tpu.dot_dimension_numbers<[1], [0], [0], [1], [0, 0, 1, 1], [], []>} : vector<8x128xf32>, vector<128x128xf32>, vector<8x128xf32> -> vector<8x128xf32>
    %18 = vector.broadcast %6 : vector<1x128xf32> to vector<8x128xf32>
    %19 = arith.addf %17, %18 : vector<8x128xf32>
    %20 = tpu.iota {dimensions = array<i32: 1>} : vector<8x128xi32>
    %21 = math.tanh %19 : vector<8x128xf32>
    %22 = math.absf %19 : vector<8x128xf32>
    %cst_12 = arith.constant 0.000000e+00 : f32
    %23 = vector.broadcast %cst_12 : f32 to vector<8x128xf32>
    %24 = arith.subf %23, %22 : vector<8x128xf32>
    %25 = math.exp %24 : vector<8x128xf32>
    %26 = math.log1p %25 : vector<8x128xf32>
    %cst_13 = arith.constant 0.000000e+00 : f32
    %27 = vector.broadcast %cst_13 : f32 to vector<8x128xf32>
    %28 = arith.maximumf %19, %27 : vector<8x128xf32>
    %29 = arith.addf %26, %28 : vector<8x128xf32>
    %cst_14 = arith.constant 9.99999974E-5 : f32
    %30 = vector.broadcast %cst_14 : f32 to vector<8x128xf32>
    %31 = arith.addf %29, %30 : vector<8x128xf32>
    %c4_i32 = arith.constant 4 : i32
    %32 = vector.broadcast %c4_i32 : i32 to vector<8x128xi32>
    %33 = arith.cmpi slt, %20, %32 : vector<8x128xi32>
    %c8_i32 = arith.constant 8 : i32
    %34 = vector.broadcast %c8_i32 : i32 to vector<8x128xi32>
    %35 = arith.cmpi slt, %20, %34 : vector<8x128xi32>
    %cst_15 = arith.constant 0.000000e+00 : f32
    %36 = vector.broadcast %cst_15 : f32 to vector<8x128xf32>
    %37 = arith.select %35, %31, %36 : vector<8x128xi1>, vector<8x128xf32>
    %38 = arith.select %33, %21, %37 : vector<8x128xi1>, vector<8x128xf32>
    %c0_16 = arith.constant 0 : index
    %c0_17 = arith.constant 0 : index
    %39 = vector.load %arg3[%c0_16, %c0_17] : memref<8x128xf32, #tpu.memory_space<vmem>>, vector<8x128xf32>
    tpu.vector_store %arg3[%c0_16, %c0_17], %38 {strides = array<i32>} : memref<8x128xf32, #tpu.memory_space<vmem>>, vector<8x128xf32>,
    return
  }
  func.func @transform_0(%arg0: i32) -> (i32, i32) {
    %c0_i32 = arith.constant 0 : i32
    %c0_i32_0 = arith.constant 0 : i32
    return %arg0, %c0_i32 : i32, i32
  }
  func.func @transform_1(%arg0: i32) -> (i32, i32) {
    %c0_i32 = arith.constant 0 : i32
    %c0_i32_0 = arith.constant 0 : i32
    %c0_i32_1 = arith.constant 0 : i32
    return %c0_i32, %c0_i32_0 : i32, i32
  }
  func.func @transform_2(%arg0: i32) -> (i32, i32) {
    %c0_i32 = arith.constant 0 : i32
    %c0_i32_0 = arith.constant 0 : i32
    return %arg0, %c0_i32 : i32, i32
  }
}

</mosaic_0001>

<llo_original>
// kernel: actor_forward.1
$region0: #{actor_forward.1}
  #allocation0 [shape = 'u32[]', space=smem, size = 0x4, offset = 0x4, fixed_abs, tag = 'smem constant byte address 0x4 - core index']
  #allocation1 [shape = 'u32[144,128]{1,0:T(1,128)}', space=vmem, size = 0x12000, scoped, tag = 'internal scratch']
  %s0 = inlined_call_operand.hbm [shape: f32[8,32], index: 0, kind: input, shape index: {}]
  %s1 = inlined_call_operand.hbm [shape: f32[312,128], index: 1, kind: input, shape index: {}]
  %s2 = inlined_call_operand.vmem [shape: f32[8,128], index: 2, kind: output, shape index: {}]
  %s3 = sld [smem:[#allocation0]]
  $region26: #{actor_forward.1} parent=0
    _
  %s5 = ssub.s32 1, %s3
  %s6 = scalar_select 0, %s5, %s3
  $region1: #{actor_forward.1} parent=0
    #allocation2 [shape = 'u8[4096]{0}', space=vmem, size = 0x1000, scoped, tag = 'input window, operand 0, single buffered']
    #allocation3 [shape = 's32[1]{0}', space=sflag, size = 0x4, scoped, tag = 'scoped memory for actor_forward.1']
    #allocation4 [shape = 'u8[159744]{0}', space=vmem, size = 0x27000, scoped, tag = 'input window, operand 1, single buffered']
    #allocation5 [shape = 's32[1]{0}', space=sflag, size = 0x4, scoped, tag = 'scoped memory for actor_forward.1']
    %7 = vsyncpa [#allocation3], 0
    %8 = vsyncpa [#allocation5], 0
    // Predicated region
    $region2: #{actor_forward.1} parent=1 // pred_check
      _
    $region3: #{actor_forward.1} parent=1 // pred_check_branch
      %10 = sbr.rel (0) target = $region5
    $region4: #{actor_forward.1} parent=1 // pred_region
      %s12 = ssub.s32 128, 128
      %13 = vsyncadd [#allocation3], %s12
      %s15 = sshll.u32 [#allocation2], 4
      %s16 = int_to_ptr.vmem [resolvable:$true] %s15
      %18 = dma.hbm_to_vmem [thread:$0]  %s0, 128, %s16, [#allocation3]
    $region5: #{actor_forward.1} parent=1 // pred_fallthru
      _
    // Predicated region
    $region6: #{actor_forward.1} parent=1 // pred_check
      _
    $region7: #{actor_forward.1} parent=1 // pred_check_branch
      %20 = sbr.rel (0) target = $region9
    $region8: #{actor_forward.1} parent=1 // pred_region
      %s22 = ssub.s32 4992, 4992
      %23 = vsyncadd [#allocation5], %s22
      %s24 = sshll.u32 [#allocation4], 4
      %s25 = int_to_ptr.vmem [resolvable:$true] %s24
      %30 = dma.hbm_to_vmem [thread:$0]  %s1, 4992, %s25, [#allocation5], 128, 128, 8
    $region9: #{actor_forward.1} parent=1 // pred_fallthru
      _
    // Predicated region
    $region10: #{actor_forward.1} parent=1 // pred_check
      _
    $region11: #{actor_forward.1} parent=1 // pred_check_branch
      %32 = sbr.rel (0) target = $region13
    $region12: #{actor_forward.1} parent=1 // pred_region
      %33 = dma.done [#allocation3], 128
    $region13: #{actor_forward.1} parent=1 // pred_fallthru
      _
    // Predicated region
    $region14: #{actor_forward.1} parent=1 // pred_check
      _
    $region15: #{actor_forward.1} parent=1 // pred_check_branch
      %35 = sbr.rel (0) target = $region17
    $region16: #{actor_forward.1} parent=1 // pred_region
      %36 = dma.done [#allocation5], 4992
    $region17: #{actor_forward.1} parent=1 // pred_fallthru
      _
    %v37 = vld [vmem:[#allocation2] sm:$0xff]
    %v38 = vld [vmem:[#allocation4] sm:$0xff]
    %v39 = vld [vmem:[#allocation4 + $0x8] sm:$0xff]
    %v40 = vld [vmem:[#allocation4 + $0x10] sm:$0xff]
    %v41 = vld [vmem:[#allocation4 + $0x18] sm:$0xff]
    %v42 = vld [vmem:[#allocation4 + $0x20] sm:$0x1]
    %v43 = vld [vmem:[#allocation4 + $0x28] sm:$0xff]
    %v44 = vld [vmem:[#allocation4 + $0x30] sm:$0xff]
    %v45 = vld [vmem:[#allocation4 + $0x38] sm:$0xff]
    %v46 = vld [vmem:[#allocation4 + $0x40] sm:$0xff]
    %v47 = vld [vmem:[#allocation4 + $0x48] sm:$0xff]
    %v48 = vld [vmem:[#allocation4 + $0x50] sm:$0xff]
    %v49 = vld [vmem:[#allocation4 + $0x58] sm:$0xff]
    %v50 = vld [vmem:[#allocation4 + $0x60] sm:$0xff]
    %v51 = vld [vmem:[#allocation4 + $0x68] sm:$0xff]
    %v52 = vld [vmem:[#allocation4 + $0x70] sm:$0xff]
    %v53 = vld [vmem:[#allocation4 + $0x78] sm:$0xff]
    %v54 = vld [vmem:[#allocation4 + $0x80] sm:$0xff]
    %v55 = vld [vmem:[#allocation4 + $0x88] sm:$0xff]
    %v56 = vld [vmem:[#allocation4 + $0x90] sm:$0xff]
    %v57 = vld [vmem:[#allocation4 + $0x98] sm:$0xff]
    %v58 = vld [vmem:[#allocation4 + $0xa0] sm:$0xff]
    %v59 = vld [vmem:[#allocation4 + $0xa8] sm:$0x1]
    %v60 = vld [vmem:[#allocation4 + $0xb0] sm:$0xff]
    %v61 = vld [vmem:[#allocation4 + $0xb8] sm:$0xff]
    %v62 = vld [vmem:[#allocation4 + $0xc0] sm:$0xff]
    %v63 = vld [vmem:[#allocation4 + $0xc8] sm:$0xff]
    %v64 = vld [vmem:[#allocation4 + $0xd0] sm:$0xff]
    %v65 = vld [vmem:[#allocation4 + $0xd8] sm:$0xff]
    %v66 = vld [vmem:[#allocation4 + $0xe0] sm:$0xff]
    %v67 = vld [vmem:[#allocation4 + $0xe8] sm:$0xff]
    %v68 = vld [vmem:[#allocation4 + $0xf0] sm:$0xff]
    %v69 = vld [vmem:[#allocation4 + $0xf8] sm:$0xff]
    %v70 = vld [vmem:[#allocation4 + $0x100] sm:$0xff]
    %v71 = vld [vmem:[#allocation4 + $0x108] sm:$0xff]
    %v72 = vld [vmem:[#allocation4 + $0x110] sm:$0xff]
    %v73 = vld [vmem:[#allocation4 + $0x118] sm:$0xff]
    %v74 = vld [vmem:[#allocation4 + $0x120] sm:$0xff]
    %v75 = vld [vmem:[#allocation4 + $0x128] sm:$0xff]
    %v76 = vld [vmem:[#allocation4 + $0x130] sm:$0x1]
    %v77 = vlaneseq
    %v78 = vshrl.u32 %v77, 7
    %v79 = vsub.s32 0, %v78
    %v80 = vrot.slane %v42, %v79
    %vm81 = vcmask 261120
    %v83 = vsel %vm81, %v37, 0
    %85 = vmatprep.subr.mxu0 0.0
    %86 = vmatpush1.msra.mxu0 %v38
    %87 = vmatprep.subr.mxu0 0.0
    %88 = vmatpush1.msra.mxu0 %v39
    %89 = vmatprep.subr.mxu0 0.0
    %90 = vmatpush1.msra.mxu0 %v40
    %91 = vmatprep.subr.mxu0 0.0
    %92 = vmatpush1.msra.mxu0 %v41
    %93 = vmatprep.subr.mxu0 0.0
    %94 = vmatpush1.msra.mxu0 0.0
    %95 = vmatprep.subr.mxu0 0.0
    %96 = vmatpush1.msra.mxu0 0.0
    %97 = vmatprep.subr.mxu0 0.0
    %98 = vmatpush1.msra.mxu0 0.0
    %99 = vmatprep.subr.mxu0 0.0
    %100 = vmatpush1.msra.mxu0 0.0
    %101 = vmatprep.subr.mxu0 0.0
    %102 = vmatpush1.msra.mxu0 0.0
    %103 = vmatprep.subr.mxu0 0.0
    %104 = vmatpush1.msra.mxu0 0.0
    %105 = vmatprep.subr.mxu0 0.0
    %106 = vmatpush1.msra.mxu0 0.0
    %107 = vmatprep.subr.mxu0 0.0
    %108 = vmatpush1.msra.mxu0 0.0
    %109 = vmatprep.subr.mxu0 0.0
    %110 = vmatpush1.msra.mxu0 0.0
    %111 = vmatprep.subr.mxu0 0.0
    %112 = vmatpush1.msra.mxu0 0.0
    %113 = vmatprep.subr.mxu0 0.0
    %114 = vmatpush1.msra.mxu0 0.0
    %115 = vmatprep.subr.mxu0 0.0
    %116 = vmatpush1.msra.mxu0 0.0
    %117 = vmatprep.subr.mxu0 0.0
    %118 = vmatpush1.msra.mxu0 0.0
    %119 = vmatprep.subr.mxu0 0.0
    %120 = vmatpush1.msra.mxu0 0.0
    %121 = vmatprep.subr.mxu0 0.0
    %122 = vmatpush1.msra.mxu0 0.0
    %123 = vmatprep.subr.mxu0 0.0
    %124 = vmatpush1.msra.mxu0 0.0
    %125 = vmatprep.subr.mxu0 0.0
    %126 = vmatpush1.msra.mxu0 0.0
    %127 = vmatprep.subr.mxu0 0.0
    %128 = vmatpush1.msra.mxu0 0.0
    %129 = vmatprep.subr.mxu0 0.0
    %130 = vmatpush1.msra.mxu0 0.0
    %131 = vmatprep.subr.mxu0 0.0
    %132 = vmatpush1.msra.mxu0 0.0
    %133 = vmatprep.subr.mxu0 0.0
    %134 = vmatpush1.msra.mxu0 0.0
    %135 = vmatprep.subr.mxu0 0.0
    %136 = vmatpush1.msra.mxu0 0.0
    %137 = vmatprep.subr.mxu0 0.0
    %138 = vmatpush1.msra.mxu0 0.0
    %139 = vmatprep.subr.mxu0 0.0
    %140 = vmatpush1.msra.mxu0 0.0
    %141 = vmatprep.subr.mxu0 0.0
    %142 = vmatpush1.msra.mxu0 0.0
    %143 = vmatprep.subr.mxu0 0.0
    %144 = vmatpush1.msra.mxu0 0.0
    %145 = vmatprep.subr.mxu0 0.0
    %146 = vmatpush1.msra.mxu0 0.0
    %147 = vmatprep.subr.mxu0 0.0
    %148 = vmatpush1.msra.mxu0 0.0
    %149 = vmatprep.mubr.f32.mxu0 0.0
    %150 = vmatmul.mubr.f32.gmra.mrb[0].mxu0 %v83
    %v151 = vpop.f32.mrb[0].mxu0
    %v152 = vadd.f32 %v80, %v151
    %v153 = vpop.f32.mrb[0].mxu0
    %154 = vdwg.mxu0
    %v155 = vmax.f32 %v152, 0.0
    %v156 = vlaneseq
    %v157 = vshrl.u32 %v156, 7
    %v158 = vsub.s32 0, %v157
    %v159 = vrot.slane %v59, %v158
    %160 = vmatprep.subr.mxu0 0.0
    %161 = vmatpush1.msra.mxu0 %v43
    %162 = vmatprep.subr.mxu0 0.0
    %163 = vmatpush1.msra.mxu0 %v44
    %164 = vmatprep.subr.mxu0 0.0
    %165 = vmatpush1.msra.mxu0 %v45
    %166 = vmatprep.subr.mxu0 0.0
    %167 = vmatpush1.msra.mxu0 %v46
    %168 = vmatprep.subr.mxu0 0.0
    %169 = vmatpush1.msra.mxu0 %v47
    %170 = vmatprep.subr.mxu0 0.0
    %171 = vmatpush1.msra.mxu0 %v48
    %172 = vmatprep.subr.mxu0 0.0
    %173 = vmatpush1.msra.mxu0 %v49
    %174 = vmatprep.subr.mxu0 0.0
    %175 = vmatpush1.msra.mxu0 %v50
    %176 = vmatprep.subr.mxu0 0.0
    %177 = vmatpush1.msra.mxu0 %v51
    %178 = vmatprep.subr.mxu0 0.0
    %179 = vmatpush1.msra.mxu0 %v52
    %180 = vmatprep.subr.mxu0 0.0
    %181 = vmatpush1.msra.mxu0 %v53
    %182 = vmatprep.subr.mxu0 0.0
    %183 = vmatpush1.msra.mxu0 %v54
    %184 = vmatprep.subr.mxu0 0.0
    %185 = vmatpush1.msra.mxu0 %v55
    %186 = vmatprep.subr.mxu0 0.0
    %187 = vmatpush1.msra.mxu0 %v56
    %188 = vmatprep.subr.mxu0 0.0
    %189 = vmatpush1.msra.mxu0 %v57
    %190 = vmatprep.subr.mxu0 0.0
    %191 = vmatpush1.msra.mxu0 %v58
    %192 = vmatprep.subr.mxu0 0.0
    %193 = vmatpush1.msra.mxu0 0.0
    %194 = vmatprep.subr.mxu0 0.0
    %195 = vmatpush1.msra.mxu0 0.0
    %196 = vmatprep.subr.mxu0 0.0
    %197 = vmatpush1.msra.mxu0 0.0
    %198 = vmatprep.subr.mxu0 0.0
    %199 = vmatpush1.msra.mxu0 0.0
    %200 = vmatprep.subr.mxu0 0.0
    %201 = vmatpush1.msra.mxu0 0.0
    %202 = vmatprep.subr.mxu0 0.0
    %203 = vmatpush1.msra.mxu0 0.0
    %204 = vmatprep.subr.mxu0 0.0
    %205 = vmatpush1.msra.mxu0 0.0
    %206 = vmatprep.subr.mxu0 0.0
    %207 = vmatpush1.msra.mxu0 0.0
    %208 = vmatprep.subr.mxu0 0.0
    %209 = vmatpush1.msra.mxu0 0.0
    %210 = vmatprep.subr.mxu0 0.0
    %211 = vmatpush1.msra.mxu0 0.0
    %212 = vmatprep.subr.mxu0 0.0
    %213 = vmatpush1.msra.mxu0 0.0
    %214 = vmatprep.subr.mxu0 0.0
    %215 = vmatpush1.msra.mxu0 0.0
    %216 = vmatprep.subr.mxu0 0.0
    %217 = vmatpush1.msra.mxu0 0.0
    %218 = vmatprep.subr.mxu0 0.0
    %219 = vmatpush1.msra.mxu0 0.0
    %220 = vmatprep.subr.mxu0 0.0
    %221 = vmatpush1.msra.mxu0 0.0
    %222 = vmatprep.subr.mxu0 0.0
    %223 = vmatpush1.msra.mxu0 0.0
    %224 = vmatprep.mubr.f32.mxu0 0.0
    %225 = vmatmul.mubr.f32.gmra.mrb[0].mxu0 %v155
    %v226 = vpop.f32.mrb[0].mxu0
    %v227 = vadd.f32 %v159, %v226
    %v228 = vpop.f32.mrb[0].mxu0
    %229 = vdwg.mxu0
    %v230 = vmax.f32 %v227, 0.0
    %v231 = vlaneseq
    %v232 = vshrl.u32 %v231, 7
    %v233 = vsub.s32 0, %v232
    %v234 = vrot.slane %v76, %v233
    %235 = vmatprep.subr.mxu0 0.0
    %236 = vmatpush1.msra.mxu0 %v60
    %237 = vmatprep.subr.mxu0 0.0
    %238 = vmatpush1.msra.mxu0 %v61
    %239 = vmatprep.subr.mxu0 0.0
    %240 = vmatpush1.msra.mxu0 %v62
    %241 = vmatprep.subr.mxu0 0.0
    %242 = vmatpush1.msra.mxu0 %v63
    %243 = vmatprep.subr.mxu0 0.0
    %244 = vmatpush1.msra.mxu0 %v64
    %245 = vmatprep.subr.mxu0 0.0
    %246 = vmatpush1.msra.mxu0 %v65
    %247 = vmatprep.subr.mxu0 0.0
    %248 = vmatpush1.msra.mxu0 %v66
    %249 = vmatprep.subr.mxu0 0.0
    %250 = vmatpush1.msra.mxu0 %v67
    %251 = vmatprep.subr.mxu0 0.0
    %252 = vmatpush1.msra.mxu0 %v68
    %253 = vmatprep.subr.mxu0 0.0
    %254 = vmatpush1.msra.mxu0 %v69
    %255 = vmatprep.subr.mxu0 0.0
    %256 = vmatpush1.msra.mxu0 %v70
    %257 = vmatprep.subr.mxu0 0.0
    %258 = vmatpush1.msra.mxu0 %v71
    %259 = vmatprep.subr.mxu0 0.0
    %260 = vmatpush1.msra.mxu0 %v72
    %261 = vmatprep.subr.mxu0 0.0
    %262 = vmatpush1.msra.mxu0 %v73
    %263 = vmatprep.subr.mxu0 0.0
    %264 = vmatpush1.msra.mxu0 %v74
    %265 = vmatprep.subr.mxu0 0.0
    %266 = vmatpush1.msra.mxu0 %v75
    %267 = vmatprep.subr.mxu0 0.0
    %268 = vmatpush1.msra.mxu0 0.0
    %269 = vmatprep.subr.mxu0 0.0
    %270 = vmatpush1.msra.mxu0 0.0
    %271 = vmatprep.subr.mxu0 0.0
    %272 = vmatpush1.msra.mxu0 0.0
    %273 = vmatprep.subr.mxu0 0.0
    %274 = vmatpush1.msra.mxu0 0.0
    %275 = vmatprep.subr.mxu0 0.0
    %276 = vmatpush1.msra.mxu0 0.0
    %277 = vmatprep.subr.mxu0 0.0
    %278 = vmatpush1.msra.mxu0 0.0
    %279 = vmatprep.subr.mxu0 0.0
    %280 = vmatpush1.msra.mxu0 0.0
    %281 = vmatprep.subr.mxu0 0.0
    %282 = vmatpush1.msra.mxu0 0.0
    %283 = vmatprep.subr.mxu0 0.0
    %284 = vmatpush1.msra.mxu0 0.0
    %285 = vmatprep.subr.mxu0 0.0
    %286 = vmatpush1.msra.mxu0 0.0
    %287 = vmatprep.subr.mxu0 0.0
    %288 = vmatpush1.msra.mxu0 0.0
    %289 = vmatprep.subr.mxu0 0.0
    %290 = vmatpush1.msra.mxu0 0.0
    %291 = vmatprep.subr.mxu0 0.0
    %292 = vmatpush1.msra.mxu0 0.0
    %293 = vmatprep.subr.mxu0 0.0
    %294 = vmatpush1.msra.mxu0 0.0
    %295 = vmatprep.subr.mxu0 0.0
    %296 = vmatpush1.msra.mxu0 0.0
    %297 = vmatprep.subr.mxu0 0.0
    %298 = vmatpush1.msra.mxu0 0.0
    %299 = vmatprep.mubr.f32.mxu0 0.0
    %300 = vmatmul.mubr.f32.gmra.mrb[0].mxu0 %v230
    %v301 = vpop.f32.mrb[0].mxu0
    %v302 = vadd.f32 %v234, %v301
    %v303 = vpop.f32.mrb[0].mxu0
    %304 = vdwg.mxu0
    %v305 = vlaneseq
    %v306 = vand.u32 %v305, 127
    %v307 = vtanh.pop %v302
    %v308 = vand.u32 2147483647, %v302
    %v309 = vsub.f32 0.0, %v308
    %v310 = vmul.f32 %v309, 1.442695
    %v311 = vpow.pop %v310
    %v312 = vadd.f32 %v311, 1.0
    %v313 = vlog2.pop %v312
    %v314 = vmul.f32 %v313, 0.6931472
    %v315 = vmul.f32 -0.5, %v311
    %v316 = vadd.f32 %v315, 1.0
    %v317 = vmul.f32 %v316, %v311
    %v318 = vand.u32 2147483647, %v311
    %vm319 = vcmp.lt.f32.partialorder %v318, 0.0004427343
    %v320 = vsel %vm319, %v317, %v314
    %v321 = vmax.f32 %v302, 0.0
    %v322 = vadd.f32 %v320, %v321
    %v323 = vadd.f32 %v322, 0.0001
    %vm324 = vcmp.lt.s32.totalorder %v306, 4
    %vm325 = vcmp.lt.s32.totalorder %v306, 8
    %v326 = vsel %vm325, %v323, 0.0
    %v327 = vsel %vm324, %v307, %v326
    %328 = vst [vmem:[%s2] sm:$0xff] %v327
    // Predicated region
    $region18: #{actor_forward.1} parent=1 // pred_check
      _
    $region19: #{actor_forward.1} parent=1 // pred_check_branch
      %330 = sbr.rel (0) target = $region21
    $region20: #{actor_forward.1} parent=1 // pred_region
      _
    $region21: #{actor_forward.1} parent=1 // pred_fallthru
      _
    // Predicated region
    $region22: #{actor_forward.1} parent=1 // pred_check
      _
    $region23: #{actor_forward.1} parent=1 // pred_check_branch
      %332 = sbr.rel (0) target = $region25
    $region24: #{actor_forward.1} parent=1 // pred_region
      _
    $region25: #{actor_forward.1} parent=1 // pred_fallthru
      _
    %333 = vsyncpa [#allocation3], 1
    %334 = vsyncpa [#allocation5], 1

</llo_original>
